<compile_context>
chip_gen: v7x
topology: tpu7x:2x2x1
jax: 0.10.0
libtpu: 0.0.40
codegen_flags: <defaults>
</compile_context>

<pallas_src>
import jax
import jax.numpy as jnp
from jax import lax
from jax.experimental import pallas as pl
from jax.experimental.pallas import tpu as pltpu  # noqa: F401  (TPU backend)

H = 8        # hidden size fixed by the module's 8x8 weights
LANE = 128   # TPU lane width; pad the hidden dim so stores are lane-dense

_DN_NT = (((1,), (1,)), ((), ()))  # contract last dims: a @ b^T without transpose


def _kvcache_kernel_cached(data_ref, qkvw_ref, kc_ref, vc_ref,
                           atten_ref, knew_ref, vnew_ref):
    data = data_ref[...]
    # Single fused QKV projection (one MXU push).  Slices land on 128-lane
    # tile boundaries, so they are free.
    qkv = jnp.dot(data, qkvw_ref[...], preferred_element_type=jnp.float32)
    q     = qkv[:, 0 * LANE:1 * LANE]
    k_new = qkv[:, 1 * LANE:2 * LANE]
    v_new = qkv[:, 2 * LANE:3 * LANE]

    # scores without materializing k^T.
    s_new = lax.dot_general(q, k_new, _DN_NT, preferred_element_type=jnp.float32)
    s_cache = lax.dot_general(q, kc_ref[...], _DN_NT,
                              preferred_element_type=jnp.float32)

    # Exact split of (q @ [k_new;k_cache]^T) @ [v_new;v_cache]; no concat,
    # no cache writeback.
    atten = (jnp.dot(s_new, v_new, preferred_element_type=jnp.float32)
             + jnp.dot(s_cache, vc_ref[...], preferred_element_type=jnp.float32))

    atten_ref[...] = atten.astype(atten_ref.dtype)
    knew_ref[...] = k_new.astype(knew_ref.dtype)
    vnew_ref[...] = v_new.astype(vnew_ref.dtype)


def _kvcache_kernel_nocache(data_ref, qkvw_ref, atten_ref, knew_ref, vnew_ref):
    data = data_ref[...]
    qkv = jnp.dot(data, qkvw_ref[...], preferred_element_type=jnp.float32)
    q     = qkv[:, 0 * LANE:1 * LANE]
    k_new = qkv[:, 1 * LANE:2 * LANE]
    v_new = qkv[:, 2 * LANE:3 * LANE]

    s = lax.dot_general(q, k_new, _DN_NT, preferred_element_type=jnp.float32)
    atten = jnp.dot(s, v_new, preferred_element_type=jnp.float32)

    atten_ref[...] = atten.astype(atten_ref.dtype)
    knew_ref[...] = k_new.astype(knew_ref.dtype)
    vnew_ref[...] = v_new.astype(vnew_ref.dtype)


def _full_spec(shape):
    # Single grid point, block = full array.
    return pl.BlockSpec(shape, lambda: (0,) * len(shape))


def _pad_lanes(x, width=LANE):
    rows, cols = x.shape
    if cols == width:
        return x
    return jnp.pad(x, ((0, 0), (0, width - cols)))


def pack_qkv_weights(q_weight, k_weight, v_weight):
    """Pad each [H,H] weight to [LANE,LANE] and concat along the output dim.

    Zero padding keeps the contraction over the padded hidden dim exact.
    Intended to be done once (weights are parameters)."""
    def pad_w(w):
        r, c = w.shape
        return jnp.pad(w, ((0, LANE - r), (0, LANE - c)))
    return jnp.concatenate([pad_w(q_weight), pad_w(k_weight), pad_w(v_weight)],
                           axis=1)   # [LANE, 3*LANE]


def kvcache_forward(data, q_weight, k_weight, v_weight,
                    k_cache=None, v_cache=None, cache=False):
    """Replicates KVCache.forward. Returns (atten, k_data, v_data)."""
    S, Hd = data.shape
    dtype = data.dtype
    itemsize = jnp.dtype(dtype).itemsize

    qkv_w = pack_qkv_weights(q_weight, k_weight, v_weight)
    data_p = _pad_lanes(data)

    use_cache = cache and (k_cache is not None) and (v_cache is not None)

    out_shapes = (
        jax.ShapeDtypeStruct((S, LANE), dtype),
        jax.ShapeDtypeStruct((S, LANE), dtype),
        jax.ShapeDtypeStruct((S, LANE), dtype),
    )
    out_specs = (_full_spec((S, LANE)), _full_spec((S, LANE)),
                 _full_spec((S, LANE)))

    if use_cache:
        C = k_cache.shape[0]
        kc_p = _pad_lanes(k_cache)
        vc_p = _pad_lanes(v_cache)
        flops = (2 * S * LANE * 3 * LANE            # fused QKV projection
                 + 2 * S * LANE * (S + C)           # q @ k^T (new + cached)
                 + 2 * S * (S + C) * LANE)          # scores @ v (new + cached)
        bytes_accessed = itemsize * (data_p.size + qkv_w.size + kc_p.size
                                     + vc_p.size + 3 * S * LANE)
        atten_p, knew_p, vnew_p = pl.pallas_call(
            _kvcache_kernel_cached,
            out_shape=out_shapes,
            in_specs=[_full_spec(data_p.shape), _full_spec(qkv_w.shape),
                      _full_spec(kc_p.shape), _full_spec(vc_p.shape)],
            out_specs=out_specs,
            cost_estimate=pl.CostEstimate(flops=flops, transcendentals=0,
                                          bytes_accessed=bytes_accessed),
        )(data_p, qkv_w, kc_p, vc_p)
    else:
        flops = 2 * S * LANE * 3 * LANE + 2 * S * LANE * S + 2 * S * S * LANE
        bytes_accessed = itemsize * (data_p.size + qkv_w.size + 3 * S * LANE)
        atten_p, knew_p, vnew_p = pl.pallas_call(
            _kvcache_kernel_nocache,
            out_shape=out_shapes,
            in_specs=[_full_spec(data_p.shape), _full_spec(qkv_w.shape)],
            out_specs=out_specs,
            cost_estimate=pl.CostEstimate(flops=flops, transcendentals=0,
                                          bytes_accessed=bytes_accessed),
        )(data_p, qkv_w)

    # Strip lane padding back to H.
    atten = atten_p[:, :Hd]
    k_new = knew_p[:, :Hd]
    v_new = vnew_p[:, :Hd]

    if use_cache:
        # torch.cat((k_data, k_cache), 0): new rows first, then cached rows.
        # Done outside the kernel so cached rows never pass through VMEM.
        k_data = jnp.concatenate([k_new, k_cache], axis=0)
        v_data = jnp.concatenate([v_new, v_cache], axis=0)
    else:
        k_data = k_new
        v_data = v_new
    return atten, k_data, v_data


def _reference(data, qw, kw, vw, k_cache=None, v_cache=None, cache=False):
    q = data @ qw
    k = data @ kw
    v = data @ vw
    if cache and k_cache is not None and v_cache is not None:
        k = jnp.concatenate([k, k_cache], axis=0)
        v = jnp.concatenate([v, v_cache], axis=0)
    atten = (q @ k.T) @ v
    return atten, k, v


if __name__ == "__main__":
    key = jax.random.PRNGKey(0)
    k0, k1, k2, k3, k4, k5 = jax.random.split(key, 6)

    S = 8          # new sequence rows
    C = 8          # cached rows

    # Deterministic parameter init (torch.randn(8,8)/10 analogue).
    q_weight = jax.random.normal(k0, (H, H), jnp.float32) / 10.0
    k_weight = jax.random.normal(k1, (H, H), jnp.float32) / 10.0
    v_weight = jax.random.normal(k2, (H, H), jnp.float32) / 10.0

    data = jax.random.normal(k3, (S, H), jnp.float32)
    k_cache = jax.random.normal(k4, (C, H), jnp.float32)
    v_cache = jax.random.normal(k5, (C, H), jnp.float32)

    # cache=True path (the interesting one).
    atten, k_out, v_out = kvcache_forward(
        data, q_weight, k_weight, v_weight, k_cache, v_cache, cache=True)
    jax.block_until_ready((atten, k_out, v_out))

    atten_ref, k_ref, v_ref = _reference(
        data, q_weight, k_weight, v_weight, k_cache, v_cache, cache=True)

    assert atten.shape == (S, H)
    assert k_out.shape == (S + C, H) and v_out.shape == (S + C, H)
    assert jnp.allclose(atten, atten_ref, atol=1e-4, rtol=1e-4)
    assert jnp.allclose(k_out, k_ref, atol=1e-5, rtol=1e-5)
    assert jnp.allclose(v_out, v_ref, atol=1e-5, rtol=1e-5)

    # cache=False path.
    atten2, k2_out, v2_out = kvcache_forward(
        data, q_weight, k_weight, v_weight, cache=False)
    jax.block_until_ready((atten2, k2_out, v2_out))
    atten2_ref, k2_ref, v2_ref = _reference(
        data, q_weight, k_weight, v_weight, cache=False)
    assert jnp.allclose(atten2, atten2_ref, atol=1e-4, rtol=1e-4)
    assert jnp.allclose(k2_out, k2_ref, atol=1e-5, rtol=1e-5)
    assert jnp.allclose(v2_out, v2_ref, atol=1e-5, rtol=1e-5)

    print("KERNEL_OK")
</pallas_src>

<mosaic_0001>
module attributes {stable_mosaic.version = 11 : i64} {
  func.func @_kvcache_kernel_cached(%arg0: memref<8x128xf32, #tpu.memory_space<vmem>>, %arg1: memref<128x384xf32, #tpu.memory_space<vmem>>, %arg2: memref<8x128xf32, #tpu.memory_space<vmem>>, %arg3: memref<8x128xf32, #tpu.memory_space<vmem>>, %arg4: memref<8x128xf32, #tpu.memory_space<vmem>>, %arg5: memref<8x128xf32, #tpu.memory_space<vmem>>, %arg6: memref<8x128xf32, #tpu.memory_space<vmem>>) attributes {dimension_semantics = [], scalar_prefetch = 0 : i64, scratch_operands = 0 : i64, tpu.core_type = #tpu.core_type<tc>} {
    %c0 = arith.constant 0 : index
    %c0_0 = arith.constant 0 : index
    %0 = vector.load %arg0[%c0, %c0_0] : memref<8x128xf32, #tpu.memory_space<vmem>>, vector<8x128xf32>
    %c0_1 = arith.constant 0 : index
    %c0_2 = arith.constant 0 : index
    %1 = vector.load %arg1[%c0_1, %c0_2] : memref<128x384xf32, #tpu.memory_space<vmem>>, vector<128x384xf32>
    %cst = arith.constant dense<0.000000e+00> : vector<8x384xf32>
    %2 = tpu.matmul %0, %1, %cst {dimension_numbers = #tpu.dot_dimension_numbers<[1], [0], [0], [1], [0, 0, 1, 1], [], []>} : vector<8x128xf32>, vector<128x384xf32>, vector<8x384xf32> -> vector<8x384xf32>
    %3 = vector.extract_strided_slice %2 {offsets = [0, 0], sizes = [8, 128], strides = [1, 1]} : vector<8x384xf32> to vector<8x128xf32>
    %4 = vector.extract_strided_slice %2 {offsets = [0, 128], sizes = [8, 128], strides = [1, 1]} : vector<8x384xf32> to vector<8x128xf32>
    %5 = vector.extract_strided_slice %2 {offsets = [0, 256], sizes = [8, 128], strides = [1, 1]} : vector<8x384xf32> to vector<8x128xf32>
    %cst_3 = arith.constant dense<0.000000e+00> : vector<8x8xf32>
    %6 = tpu.matmul %3, %4, %cst_3 {dimension_numbers = #tpu.dot_dimension_numbers<[1], [1], [0], [0], [0, 0, 1, 0], [], []>} : vector<8x128xf32>, vector<8x128xf32>, vector<8x8xf32> -> vector<8x8xf32>
    %c0_4 = arith.constant 0 : index
    %c0_5 = arith.constant 0 : index
    %7 = vector.load %arg2[%c0_4, %c0_5] : memref<8x128xf32, #tpu.memory_space<vmem>>, vector<8x128xf32>
    %cst_6 = arith.constant dense<0.000000e+00> : vector<8x8xf32>
    %8 = tpu.matmul %3, %7, %cst_6 {dimension_numbers = #tpu.dot_dimension_numbers<[1], [1], [0], [0], [0, 0, 1, 0], [], []>} : vector<8x128xf32>, vector<8x128xf32>, vector<8x8xf32> -> vector<8x8xf32>
    %cst_7 = arith.constant dense<0.000000e+00> : vector<8x128xf32>
    %9 = tpu.matmul %6, %5, %cst_7 {dimension_numbers = #tpu.dot_dimension_numbers<[1], [0], [0], [1], [0, 0, 1, 1], [], []>} : vector<8x8xf32>, vector<8x128xf32>, vector<8x128xf32> -> vector<8x128xf32>
    %c0_8 = arith.constant 0 : index
    %c0_9 = arith.constant 0 : index
    %10 = vector.load %arg3[%c0_8, %c0_9] : memref<8x128xf32, #tpu.memory_space<vmem>>, vector<8x128xf32>
    %cst_10 = arith.constant dense<0.000000e+00> : vector<8x128xf32>
    %11 = tpu.matmul %8, %10, %cst_10 {dimension_numbers = #tpu.dot_dimension_numbers<[1], [0], [0], [1], [0, 0, 1, 1], [], []>} : vector<8x8xf32>, vector<8x128xf32>, vector<8x128xf32> -> vector<8x128xf32>
    %12 = arith.addf %9, %11 : vector<8x128xf32>
    %c0_11 = arith.constant 0 : index
    %c0_12 = arith.constant 0 : index
    %13 = vector.load %arg4[%c0_11, %c0_12] : memref<8x128xf32, #tpu.memory_space<vmem>>, vector<8x128xf32>
    tpu.vector_store %arg4[%c0_11, %c0_12], %12 {strides = array<i32>} : memref<8x128xf32, #tpu.memory_space<vmem>>, vector<8x128xf32>,
    %c0_13 = arith.constant 0 : index
    %c0_14 = arith.constant 0 : index
    %14 = vector.load %arg5[%c0_13, %c0_14] : memref<8x128xf32, #tpu.memory_space<vmem>>, vector<8x128xf32>
    tpu.vector_store %arg5[%c0_13, %c0_14], %4 {strides = array<i32>} : memref<8x128xf32, #tpu.memory_space<vmem>>, vector<8x128xf32>,
    %c0_15 = arith.constant 0 : index
    %c0_16 = arith.constant 0 : index
    %15 = vector.load %arg6[%c0_15, %c0_16] : memref<8x128xf32, #tpu.memory_space<vmem>>, vector<8x128xf32>
    tpu.vector_store %arg6[%c0_15, %c0_16], %5 {strides = array<i32>} : memref<8x128xf32, #tpu.memory_space<vmem>>, vector<8x128xf32>,
    return
  }
}

</mosaic_0001>

<llo_original>
// kernel: tpu_custom_call.1
$region0: #{tpu_custom_call.1}
  #allocation0 [shape = 'u32[]', space=smem, size = 0x4, offset = 0x4, fixed_abs, tag = 'smem constant byte address 0x4 - core index']
  #allocation1 [shape = 'u32[144,128]{1,0:T(1,128)}', space=vmem, size = 0x12000, scoped, tag = 'internal scratch']
  %s0 = inlined_call_operand.hbm [shape: f32[8,128], index: 0, kind: input, shape index: {}]
  %s1 = inlined_call_operand.hbm [shape: f32[128,384], index: 1, kind: input, shape index: {}]
  %s2 = inlined_call_operand.hbm [shape: f32[8,128], index: 2, kind: input, shape index: {}]
  %s3 = inlined_call_operand.vmem [shape: f32[8,128], index: 3, kind: input, shape index: {}]
  %s4 = inlined_call_operand.hbm [shape: f32[8,128], index: 4, kind: output, shape index: {0}]
  %s5 = inlined_call_operand.hbm [shape: f32[8,128], index: 5, kind: output, shape index: {1}]
  %s6 = inlined_call_operand.hbm [shape: f32[8,128], index: 6, kind: output, shape index: {2}]
  %7 = xla_tuple %s4, %s5, %s6
  %s8 = sld [smem:[#allocation0]]
  $region54: #{tpu_custom_call.1} parent=0
    _
  %s10 = ssub.s32 1, %s8
  %s11 = scalar_select 0, %s10, %s8
  $region1: #{tpu_custom_call.1} parent=0
    #allocation2 [shape = 'u8[4096]{0}', space=vmem, size = 0x1000, scoped, tag = 'input window, operand 0, single buffered']
    #allocation3 [shape = 's32[1]{0}', space=sflag, size = 0x4, scoped, tag = 'scoped memory for tpu_custom_call.1']
    #allocation4 [shape = 's32[1]{0}', space=sflag, size = 0x4, scoped, tag = 'scoped memory for tpu_custom_call.1']
    #allocation5 [shape = 'u8[196608]{0}', space=vmem, size = 0x30000, scoped, tag = 'input window, operand 1, single buffered']
    #allocation6 [shape = 's32[1]{0}', space=sflag, size = 0x4, scoped, tag = 'scoped memory for tpu_custom_call.1']
    #allocation7 [shape = 'u8[4096]{0}', space=vmem, size = 0x1000, scoped, tag = 'input window, operand 2, single buffered']
    #allocation8 [shape = 'u8[4096]{0}', space=vmem, size = 0x1000, scoped, tag = 'output window, operand 0, single buffered']
    #allocation9 [shape = 'u8[4096]{0}', space=vmem, size = 0x1000, scoped, tag = 'output window, operand 1, single buffered']
    #allocation10 [shape = 's32[1]{0}', space=sflag, size = 0x4, scoped, tag = 'scoped memory for tpu_custom_call.1']
    #allocation11 [shape = 'u8[4096]{0}', space=vmem, size = 0x1000, scoped, tag = 'output window, operand 2, single buffered']
    %12 = vsyncpa [#allocation3], 0
    %13 = vsyncpa [#allocation6], 0
    %14 = vsyncpa [#allocation4], 0
    %15 = vsyncpa [#allocation10], 0
    // Predicated region
    $region2: #{tpu_custom_call.1} parent=1 // pred_check
      _
    $region3: #{tpu_custom_call.1} parent=1 // pred_check_branch
      %17 = sbr.rel (0) target = $region5
    $region4: #{tpu_custom_call.1} parent=1 // pred_region
      %s19 = ssub.s32 128, 128
      %20 = vsyncadd [#allocation3], %s19
      %s22 = sshll.u32 [#allocation2], 4
      %s23 = int_to_ptr.vmem [resolvable:$true] %s22
      %25 = dma.hbm_to_vmem [thread:$0]  %s0, 128, %s23, [#allocation3]
    $region5: #{tpu_custom_call.1} parent=1 // pred_fallthru
      _
    // Predicated region
    $region6: #{tpu_custom_call.1} parent=1 // pred_check
      _
    $region7: #{tpu_custom_call.1} parent=1 // pred_check_branch
      %27 = sbr.rel (0) target = $region9
    $region8: #{tpu_custom_call.1} parent=1 // pred_region
      %s29 = ssub.s32 6144, 6144
      %30 = vsyncadd [#allocation6], %s29
      %s31 = sshll.u32 [#allocation5], 4
      %s32 = int_to_ptr.vmem [resolvable:$true] %s31
      %37 = dma.hbm_to_vmem [thread:$0]  %s1, 6144, %s32, [#allocation6], 384, 384, 24
    $region9: #{tpu_custom_call.1} parent=1 // pred_fallthru
      _
    // Predicated region
    $region10: #{tpu_custom_call.1} parent=1 // pred_check
      _
    $region11: #{tpu_custom_call.1} parent=1 // pred_check_branch
      %39 = sbr.rel (0) target = $region13
    $region12: #{tpu_custom_call.1} parent=1 // pred_region
      %s41 = ssub.s32 128, 128
      %42 = vsyncadd [#allocation6], %s41
      %s44 = sshll.u32 [#allocation7], 4
      %s45 = int_to_ptr.vmem [resolvable:$true] %s44
      %47 = dma.hbm_to_vmem [thread:$0]  %s2, 128, %s45, [#allocation6]
    $region13: #{tpu_custom_call.1} parent=1 // pred_fallthru
      _
    // Predicated region
    $region14: #{tpu_custom_call.1} parent=1 // pred_check
      _
    $region15: #{tpu_custom_call.1} parent=1 // pred_check_branch
      %49 = sbr.rel (0) target = $region17
    $region16: #{tpu_custom_call.1} parent=1 // pred_region
      _
    $region17: #{tpu_custom_call.1} parent=1 // pred_fallthru
      _
    // Predicated region
    $region18: #{tpu_custom_call.1} parent=1 // pred_check
      _
    $region19: #{tpu_custom_call.1} parent=1 // pred_check_branch
      %51 = sbr.rel (0) target = $region21
    $region20: #{tpu_custom_call.1} parent=1 // pred_region
      %52 = dma.done [#allocation3], 128
    $region21: #{tpu_custom_call.1} parent=1 // pred_fallthru
      _
    // Predicated region
    $region22: #{tpu_custom_call.1} parent=1 // pred_check
      _
    $region23: #{tpu_custom_call.1} parent=1 // pred_check_branch
      %54 = sbr.rel (0) target = $region25
    $region24: #{tpu_custom_call.1} parent=1 // pred_region
      %55 = dma.done [#allocation6], 6144
    $region25: #{tpu_custom_call.1} parent=1 // pred_fallthru
      _
    // Predicated region
    $region26: #{tpu_custom_call.1} parent=1 // pred_check
      _
    $region27: #{tpu_custom_call.1} parent=1 // pred_check_branch
      %57 = sbr.rel (0) target = $region29
    $region28: #{tpu_custom_call.1} parent=1 // pred_region
      %58 = dma.done [#allocation6], 128
    $region29: #{tpu_custom_call.1} parent=1 // pred_fallthru
      _
    %v59 = vld [vmem:[#allocation2] sm:$0xff]
    %v60 = vld [vmem:[#allocation5] sm:$0xff]
    %v61 = vld [vmem:[#allocation5 + $0x8] sm:$0xff]
    %v62 = vld [vmem:[#allocation5 + $0x10] sm:$0xff]
    %v63 = vld [vmem:[#allocation5 + $0x18] sm:$0xff]
    %v64 = vld [vmem:[#allocation5 + $0x20] sm:$0xff]
    %v65 = vld [vmem:[#allocation5 + $0x28] sm:$0xff]
    %v66 = vld [vmem:[#allocation5 + $0x30] sm:$0xff]
    %v67 = vld [vmem:[#allocation5 + $0x38] sm:$0xff]
    %v68 = vld [vmem:[#allocation5 + $0x40] sm:$0xff]
    %v69 = vld [vmem:[#allocation5 + $0x48] sm:$0xff]
    %v70 = vld [vmem:[#allocation5 + $0x50] sm:$0xff]
    %v71 = vld [vmem:[#allocation5 + $0x58] sm:$0xff]
    %v72 = vld [vmem:[#allocation5 + $0x60] sm:$0xff]
    %v73 = vld [vmem:[#allocation5 + $0x68] sm:$0xff]
    %v74 = vld [vmem:[#allocation5 + $0x70] sm:$0xff]
    %v75 = vld [vmem:[#allocation5 + $0x78] sm:$0xff]
    %v76 = vld [vmem:[#allocation5 + $0x80] sm:$0xff]
    %v77 = vld [vmem:[#allocation5 + $0x88] sm:$0xff]
    %v78 = vld [vmem:[#allocation5 + $0x90] sm:$0xff]
    %v79 = vld [vmem:[#allocation5 + $0x98] sm:$0xff]
    %v80 = vld [vmem:[#allocation5 + $0xa0] sm:$0xff]
    %v81 = vld [vmem:[#allocation5 + $0xa8] sm:$0xff]
    %v82 = vld [vmem:[#allocation5 + $0xb0] sm:$0xff]
    %v83 = vld [vmem:[#allocation5 + $0xb8] sm:$0xff]
    %v84 = vld [vmem:[#allocation5 + $0xc0] sm:$0xff]
    %v85 = vld [vmem:[#allocation5 + $0xc8] sm:$0xff]
    %v86 = vld [vmem:[#allocation5 + $0xd0] sm:$0xff]
    %v87 = vld [vmem:[#allocation5 + $0xd8] sm:$0xff]
    %v88 = vld [vmem:[#allocation5 + $0xe0] sm:$0xff]
    %v89 = vld [vmem:[#allocation5 + $0xe8] sm:$0xff]
    %v90 = vld [vmem:[#allocation5 + $0xf0] sm:$0xff]
    %v91 = vld [vmem:[#allocation5 + $0xf8] sm:$0xff]
    %v92 = vld [vmem:[#allocation5 + $0x100] sm:$0xff]
    %v93 = vld [vmem:[#allocation5 + $0x108] sm:$0xff]
    %v94 = vld [vmem:[#allocation5 + $0x110] sm:$0xff]
    %v95 = vld [vmem:[#allocation5 + $0x118] sm:$0xff]
    %v96 = vld [vmem:[#allocation5 + $0x120] sm:$0xff]
    %v97 = vld [vmem:[#allocation5 + $0x128] sm:$0xff]
    %v98 = vld [vmem:[#allocation5 + $0x130] sm:$0xff]
    %v99 = vld [vmem:[#allocation5 + $0x138] sm:$0xff]
    %v100 = vld [vmem:[#allocation5 + $0x140] sm:$0xff]
    %v101 = vld [vmem:[#allocation5 + $0x148] sm:$0xff]
    %v102 = vld [vmem:[#allocation5 + $0x150] sm:$0xff]
    %v103 = vld [vmem:[#allocation5 + $0x158] sm:$0xff]
    %v104 = vld [vmem:[#allocation5 + $0x160] sm:$0xff]
    %v105 = vld [vmem:[#allocation5 + $0x168] sm:$0xff]
    %v106 = vld [vmem:[#allocation5 + $0x170] sm:$0xff]
    %v107 = vld [vmem:[#allocation5 + $0x178] sm:$0xff]
    %108 = vmatprep.subr.mxu0 %v61
    %109 = vmatpush1.msra.mxu0 %v60
    %110 = vmatprep.subr.mxu0 %v64
    %111 = vmatpush1.msra.mxu0 %v63
    %112 = vmatprep.subr.mxu0 %v67
    %113 = vmatpush1.msra.mxu0 %v66
    %114 = vmatprep.subr.mxu0 %v70
    %115 = vmatpush1.msra.mxu0 %v69
    %116 = vmatprep.subr.mxu0 %v73
    %117 = vmatpush1.msra.mxu0 %v72
    %118 = vmatprep.subr.mxu0 %v76
    %119 = vmatpush1.msra.mxu0 %v75
    %120 = vmatprep.subr.mxu0 %v79
    %121 = vmatpush1.msra.mxu0 %v78
    %122 = vmatprep.subr.mxu0 %v82
    %123 = vmatpush1.msra.mxu0 %v81
    %124 = vmatprep.subr.mxu0 %v85
    %125 = vmatpush1.msra.mxu0 %v84
    %126 = vmatprep.subr.mxu0 %v88
    %127 = vmatpush1.msra.mxu0 %v87
    %128 = vmatprep.subr.mxu0 %v91
    %129 = vmatpush1.msra.mxu0 %v90
    %130 = vmatprep.subr.mxu0 %v94
    %131 = vmatpush1.msra.mxu0 %v93
    %132 = vmatprep.subr.mxu0 %v97
    %133 = vmatpush1.msra.mxu0 %v96
    %134 = vmatprep.subr.mxu0 %v100
    %135 = vmatpush1.msra.mxu0 %v99
    %136 = vmatprep.subr.mxu0 %v103
    %137 = vmatpush1.msra.mxu0 %v102
    %138 = vmatprep.subr.mxu0 %v106
    %139 = vmatpush1.msra.mxu0 %v105
    %140 = vmatprep.subr.mxu0 0.0
    %141 = vmatpush1.msra.mxu0 0.0
    %142 = vmatprep.subr.mxu0 0.0
    %143 = vmatpush1.msra.mxu0 0.0
    %144 = vmatprep.subr.mxu0 0.0
    %145 = vmatpush1.msra.mxu0 0.0
    %146 = vmatprep.subr.mxu0 0.0
    %147 = vmatpush1.msra.mxu0 0.0
    %148 = vmatprep.subr.mxu0 0.0
    %149 = vmatpush1.msra.mxu0 0.0
    %150 = vmatprep.subr.mxu0 0.0
    %151 = vmatpush1.msra.mxu0 0.0
    %152 = vmatprep.subr.mxu0 0.0
    %153 = vmatpush1.msra.mxu0 0.0
    %154 = vmatprep.subr.mxu0 0.0
    %155 = vmatpush1.msra.mxu0 0.0
    %156 = vmatprep.subr.mxu0 0.0
    %157 = vmatpush1.msra.mxu0 0.0
    %158 = vmatprep.subr.mxu0 0.0
    %159 = vmatpush1.msra.mxu0 0.0
    %160 = vmatprep.subr.mxu0 0.0
    %161 = vmatpush1.msra.mxu0 0.0
    %162 = vmatprep.subr.mxu0 0.0
    %163 = vmatpush1.msra.mxu0 0.0
    %164 = vmatprep.subr.mxu0 0.0
    %165 = vmatpush1.msra.mxu0 0.0
    %166 = vmatprep.subr.mxu0 0.0
    %167 = vmatpush1.msra.mxu0 0.0
    %168 = vmatprep.subr.mxu0 0.0
    %169 = vmatpush1.msra.mxu0 0.0
    %170 = vmatprep.subr.mxu0 0.0
    %171 = vmatpush1.msra.mxu0 0.0
    %172 = vmatprep.mubr.f32.mxu0 0.0
    %173 = vmatmul.mubr.f32.gmra.mrb[0].mxu0 %v59
    %v174 = vpop.f32.mrb[0].mxu0
    %v175 = vadd.f32 0.0, %v174
    %v176 = vpop.f32.mrb[0].mxu0
    %v177 = vadd.f32 0.0, %v176
    %178 = vdwg.mxu0
    %179 = vmatprep.subr.mxu0 0.0
    %180 = vmatpush1.msra.mxu0 %v62
    %181 = vmatprep.subr.mxu0 0.0
    %182 = vmatpush1.msra.mxu0 %v65
    %183 = vmatprep.subr.mxu0 0.0
    %184 = vmatpush1.msra.mxu0 %v68
    %185 = vmatprep.subr.mxu0 0.0
    %186 = vmatpush1.msra.mxu0 %v71
    %187 = vmatprep.subr.mxu0 0.0
    %188 = vmatpush1.msra.mxu0 %v74
    %189 = vmatprep.subr.mxu0 0.0
    %190 = vmatpush1.msra.mxu0 %v77
    %191 = vmatprep.subr.mxu0 0.0
    %192 = vmatpush1.msra.mxu0 %v80
    %193 = vmatprep.subr.mxu0 0.0
    %194 = vmatpush1.msra.mxu0 %v83
    %195 = vmatprep.subr.mxu0 0.0
    %196 = vmatpush1.msra.mxu0 %v86
    %197 = vmatprep.subr.mxu0 0.0
    %198 = vmatpush1.msra.mxu0 %v89
    %199 = vmatprep.subr.mxu0 0.0
    %200 = vmatpush1.msra.mxu0 %v92
    %201 = vmatprep.subr.mxu0 0.0
    %202 = vmatpush1.msra.mxu0 %v95
    %203 = vmatprep.subr.mxu0 0.0
    %204 = vmatpush1.msra.mxu0 %v98
    %205 = vmatprep.subr.mxu0 0.0
    %206 = vmatpush1.msra.mxu0 %v101
    %207 = vmatprep.subr.mxu0 0.0
    %208 = vmatpush1.msra.mxu0 %v104
    %209 = vmatprep.subr.mxu0 0.0
    %210 = vmatpush1.msra.mxu0 %v107
    %211 = vmatprep.subr.mxu0 0.0
    %212 = vmatpush1.msra.mxu0 0.0
    %213 = vmatprep.subr.mxu0 0.0
    %214 = vmatpush1.msra.mxu0 0.0
    %215 = vmatprep.subr.mxu0 0.0
    %216 = vmatpush1.msra.mxu0 0.0
    %217 = vmatprep.subr.mxu0 0.0
    %218 = vmatpush1.msra.mxu0 0.0
    %219 = vmatprep.subr.mxu0 0.0
    %220 = vmatpush1.msra.mxu0 0.0
    %221 = vmatprep.subr.mxu0 0.0
    %222 = vmatpush1.msra.mxu0 0.0
    %223 = vmatprep.subr.mxu0 0.0
    %224 = vmatpush1.msra.mxu0 0.0
    %225 = vmatprep.subr.mxu0 0.0
    %226 = vmatpush1.msra.mxu0 0.0
    %227 = vmatprep.subr.mxu0 0.0
    %228 = vmatpush1.msra.mxu0 0.0
    %229 = vmatprep.subr.mxu0 0.0
    %230 = vmatpush1.msra.mxu0 0.0
    %231 = vmatprep.subr.mxu0 0.0
    %232 = vmatpush1.msra.mxu0 0.0
    %233 = vmatprep.subr.mxu0 0.0
    %234 = vmatpush1.msra.mxu0 0.0
    %235 = vmatprep.subr.mxu0 0.0
    %236 = vmatpush1.msra.mxu0 0.0
    %237 = vmatprep.subr.mxu0 0.0
    %238 = vmatpush1.msra.mxu0 0.0
    %239 = vmatprep.subr.mxu0 0.0
    %240 = vmatpush1.msra.mxu0 0.0
    %241 = vmatprep.subr.mxu0 0.0
    %242 = vmatpush1.msra.mxu0 0.0
    %243 = vmatprep.mubr.f32.mxu0 0.0
    %244 = vmatmul.mubr.f32.gmra.mrb[0].mxu0 %v59
    %v245 = vpop.f32.mrb[0].mxu0
    %v246 = vadd.f32 0.0, %v245
    %v247 = vpop.f32.mrb[0].mxu0
    %248 = vdwg.mxu0
    %249 = vmatprep.subr.mxu0 0.0
    %250 = vmatpush1.xpose.msra.mxu0 %v177
    %251 = vmatprep.subr.mxu0 0.0
    %252 = vmatpush1.xpose.msra.mxu0 0.0
    %253 = vmatprep.subr.mxu0 0.0
    %254 = vmatpush1.xpose.msra.mxu0 0.0
    %255 = vmatprep.subr.mxu0 0.0
    %256 = vmatpush1.xpose.msra.mxu0 0.0
    %257 = vmatprep.subr.mxu0 0.0
    %258 = vmatpush1.xpose.msra.mxu0 0.0
    %259 = vmatprep.subr.mxu0 0.0
    %260 = vmatpush1.xpose.msra.mxu0 0.0
    %261 = vmatprep.subr.mxu0 0.0
    %262 = vmatpush1.xpose.msra.mxu0 0.0
    %263 = vmatprep.subr.mxu0 0.0
    %264 = vmatpush1.xpose.msra.mxu0 0.0
    %265 = vmatprep.subr.mxu0 0.0
    %266 = vmatpush1.xpose.msra.mxu0 0.0
    %267 = vmatprep.subr.mxu0 0.0
    %268 = vmatpush1.xpose.msra.mxu0 0.0
    %269 = vmatprep.subr.mxu0 0.0
    %270 = vmatpush1.xpose.msra.mxu0 0.0
    %271 = vmatprep.subr.mxu0 0.0
    %272 = vmatpush1.xpose.msra.mxu0 0.0
    %273 = vmatprep.subr.mxu0 0.0
    %274 = vmatpush1.xpose.msra.mxu0 0.0
    %275 = vmatprep.subr.mxu0 0.0
    %276 = vmatpush1.xpose.msra.mxu0 0.0
    %277 = vmatprep.subr.mxu0 0.0
    %278 = vmatpush1.xpose.msra.mxu0 0.0
    %279 = vmatprep.subr.mxu0 0.0
    %280 = vmatpush1.xpose.msra.mxu0 0.0
    %281 = vmatprep.subr.mxu0 0.0
    %282 = vmatpush1.xpose.msra.mxu0 0.0
    %283 = vmatprep.subr.mxu0 0.0
    %284 = vmatpush1.xpose.msra.mxu0 0.0
    %285 = vmatprep.subr.mxu0 0.0
    %286 = vmatpush1.xpose.msra.mxu0 0.0
    %287 = vmatprep.subr.mxu0 0.0
    %288 = vmatpush1.xpose.msra.mxu0 0.0
    %289 = vmatprep.subr.mxu0 0.0
    %290 = vmatpush1.xpose.msra.mxu0 0.0
    %291 = vmatprep.subr.mxu0 0.0
    %292 = vmatpush1.xpose.msra.mxu0 0.0
    %293 = vmatprep.subr.mxu0 0.0
    %294 = vmatpush1.xpose.msra.mxu0 0.0
    %295 = vmatprep.subr.mxu0 0.0
    %296 = vmatpush1.xpose.msra.mxu0 0.0
    %297 = vmatprep.subr.mxu0 0.0
    %298 = vmatpush1.xpose.msra.mxu0 0.0
    %299 = vmatprep.subr.mxu0 0.0
    %300 = vmatpush1.xpose.msra.mxu0 0.0
    %301 = vmatprep.subr.mxu0 0.0
    %302 = vmatpush1.xpose.msra.mxu0 0.0
    %303 = vmatprep.subr.mxu0 0.0
    %304 = vmatpush1.xpose.msra.mxu0 0.0
    %305 = vmatprep.subr.mxu0 0.0
    %306 = vmatpush1.xpose.msra.mxu0 0.0
    %307 = vmatprep.subr.mxu0 0.0
    %308 = vmatpush1.xpose.msra.mxu0 0.0
    %309 = vmatprep.subr.mxu0 0.0
    %310 = vmatpush1.xpose.msra.mxu0 0.0
    %311 = vmatprep.subr.mxu0 0.0
    %312 = vmatpush1.xpose.msra.mxu0 0.0
    %313 = vmatprep.mubr.f32.mxu0 0.0
    %314 = vmatmul.mubr.f32.gmra.mrb[0].mxu0 %v175
    %v315 = vpop.f32.mrb[0].mxu0
    %v316 = vadd.f32 0.0, %v315
    %v317 = vpop.f32.mrb[0].mxu0
    %318 = vdwg.mxu0
    %v319 = vld [vmem:[#allocation7] sm:$0xff]
    %320 = vmatprep.subr.mxu0 0.0
    %321 = vmatpush1.xpose.msra.mxu0 %v319
    %322 = vmatprep.subr.mxu0 0.0
    %323 = vmatpush1.xpose.msra.mxu0 0.0
    %324 = vmatprep.subr.mxu0 0.0
    %325 = vmatpush1.xpose.msra.mxu0 0.0
    %326 = vmatprep.subr.mxu0 0.0
    %327 = vmatpush1.xpose.msra.mxu0 0.0
    %328 = vmatprep.subr.mxu0 0.0
    %329 = vmatpush1.xpose.msra.mxu0 0.0
    %330 = vmatprep.subr.mxu0 0.0
    %331 = vmatpush1.xpose.msra.mxu0 0.0
    %332 = vmatprep.subr.mxu0 0.0
    %333 = vmatpush1.xpose.msra.mxu0 0.0
    %334 = vmatprep.subr.mxu0 0.0
    %335 = vmatpush1.xpose.msra.mxu0 0.0
    %336 = vmatprep.subr.mxu0 0.0
    %337 = vmatpush1.xpose.msra.mxu0 0.0
    %338 = vmatprep.subr.mxu0 0.0
    %339 = vmatpush1.xpose.msra.mxu0 0.0
    %340 = vmatprep.subr.mxu0 0.0
    %341 = vmatpush1.xpose.msra.mxu0 0.0
    %342 = vmatprep.subr.mxu0 0.0
    %343 = vmatpush1.xpose.msra.mxu0 0.0
    %344 = vmatprep.subr.mxu0 0.0
    %345 = vmatpush1.xpose.msra.mxu0 0.0
    %346 = vmatprep.subr.mxu0 0.0
    %347 = vmatpush1.xpose.msra.mxu0 0.0
    %348 = vmatprep.subr.mxu0 0.0
    %349 = vmatpush1.xpose.msra.mxu0 0.0
    %350 = vmatprep.subr.mxu0 0.0
    %351 = vmatpush1.xpose.msra.mxu0 0.0
    %352 = vmatprep.subr.mxu0 0.0
    %353 = vmatpush1.xpose.msra.mxu0 0.0
    %354 = vmatprep.subr.mxu0 0.0
    %355 = vmatpush1.xpose.msra.mxu0 0.0
    %356 = vmatprep.subr.mxu0 0.0
    %357 = vmatpush1.xpose.msra.mxu0 0.0
    %358 = vmatprep.subr.mxu0 0.0
    %359 = vmatpush1.xpose.msra.mxu0 0.0
    %360 = vmatprep.subr.mxu0 0.0
    %361 = vmatpush1.xpose.msra.mxu0 0.0
    %362 = vmatprep.subr.mxu0 0.0
    %363 = vmatpush1.xpose.msra.mxu0 0.0
    %364 = vmatprep.subr.mxu0 0.0
    %365 = vmatpush1.xpose.msra.mxu0 0.0
    %366 = vmatprep.subr.mxu0 0.0
    %367 = vmatpush1.xpose.msra.mxu0 0.0
    %368 = vmatprep.subr.mxu0 0.0
    %369 = vmatpush1.xpose.msra.mxu0 0.0
    %370 = vmatprep.subr.mxu0 0.0
    %371 = vmatpush1.xpose.msra.mxu0 0.0
    %372 = vmatprep.subr.mxu0 0.0
    %373 = vmatpush1.xpose.msra.mxu0 0.0
    %374 = vmatprep.subr.mxu0 0.0
    %375 = vmatpush1.xpose.msra.mxu0 0.0
    %376 = vmatprep.subr.mxu0 0.0
    %377 = vmatpush1.xpose.msra.mxu0 0.0
    %378 = vmatprep.subr.mxu0 0.0
    %379 = vmatpush1.xpose.msra.mxu0 0.0
    %380 = vmatprep.subr.mxu0 0.0
    %381 = vmatpush1.xpose.msra.mxu0 0.0
    %382 = vmatprep.subr.mxu0 0.0
    %383 = vmatpush1.xpose.msra.mxu0 0.0
    %384 = vmatprep.mubr.f32.mxu0 0.0
    %385 = vmatmul.mubr.f32.gmra.mrb[0].mxu0 %v175
    %v386 = vpop.f32.mrb[0].mxu0
    %v387 = vadd.f32 0.0, %v386
    %v388 = vpop.f32.mrb[0].mxu0
    %389 = vdwg.mxu0
    %v390 = vld [vmem:[%s3] sm:$0xff]
    %vm391 = vcmask 64512
    %v393 = vsel %vm391, %v387, 0
    %395 = vmatprep.subr.mxu0 0.0
    %396 = vmatpush1.msra.mxu0 %v390
    %397 = vmatprep.subr.mxu0 0.0
    %398 = vmatpush1.msra.mxu0 0.0
    %399 = vmatprep.subr.mxu0 0.0
    %400 = vmatpush1.msra.mxu0 0.0
    %401 = vmatprep.subr.mxu0 0.0
    %402 = vmatpush1.msra.mxu0 0.0
    %403 = vmatprep.subr.mxu0 0.0
    %404 = vmatpush1.msra.mxu0 0.0
    %405 = vmatprep.subr.mxu0 0.0
    %406 = vmatpush1.msra.mxu0 0.0
    %407 = vmatprep.subr.mxu0 0.0
    %408 = vmatpush1.msra.mxu0 0.0
    %409 = vmatprep.subr.mxu0 0.0
    %410 = vmatpush1.msra.mxu0 0.0
    %411 = vmatprep.subr.mxu0 0.0
    %412 = vmatpush1.msra.mxu0 0.0
    %413 = vmatprep.subr.mxu0 0.0
    %414 = vmatpush1.msra.mxu0 0.0
    %415 = vmatprep.subr.mxu0 0.0
    %416 = vmatpush1.msra.mxu0 0.0
    %417 = vmatprep.subr.mxu0 0.0
    %418 = vmatpush1.msra.mxu0 0.0
    %419 = vmatprep.subr.mxu0 0.0
    %420 = vmatpush1.msra.mxu0 0.0
    %421 = vmatprep.subr.mxu0 0.0
    %422 = vmatpush1.msra.mxu0 0.0
    %423 = vmatprep.subr.mxu0 0.0
    %424 = vmatpush1.msra.mxu0 0.0
    %425 = vmatprep.subr.mxu0 0.0
    %426 = vmatpush1.msra.mxu0 0.0
    %427 = vmatprep.subr.mxu0 0.0
    %428 = vmatpush1.msra.mxu0 0.0
    %429 = vmatprep.subr.mxu0 0.0
    %430 = vmatpush1.msra.mxu0 0.0
    %431 = vmatprep.subr.mxu0 0.0
    %432 = vmatpush1.msra.mxu0 0.0
    %433 = vmatprep.subr.mxu0 0.0
    %434 = vmatpush1.msra.mxu0 0.0
    %435 = vmatprep.subr.mxu0 0.0
    %436 = vmatpush1.msra.mxu0 0.0
    %437 = vmatprep.subr.mxu0 0.0
    %438 = vmatpush1.msra.mxu0 0.0
    %439 = vmatprep.subr.mxu0 0.0
    %440 = vmatpush1.msra.mxu0 0.0
    %441 = vmatprep.subr.mxu0 0.0
    %442 = vmatpush1.msra.mxu0 0.0
    %443 = vmatprep.subr.mxu0 0.0
    %444 = vmatpush1.msra.mxu0 0.0
    %445 = vmatprep.subr.mxu0 0.0
    %446 = vmatpush1.msra.mxu0 0.0
    %447 = vmatprep.subr.mxu0 0.0
    %448 = vmatpush1.msra.mxu0 0.0
    %449 = vmatprep.subr.mxu0 0.0
    %450 = vmatpush1.msra.mxu0 0.0
    %451 = vmatprep.subr.mxu0 0.0
    %452 = vmatpush1.msra.mxu0 0.0
    %453 = vmatprep.subr.mxu0 0.0
    %454 = vmatpush1.msra.mxu0 0.0
    %455 = vmatprep.subr.mxu0 0.0
    %456 = vmatpush1.msra.mxu0 0.0
    %457 = vmatprep.subr.mxu0 0.0
    %458 = vmatpush1.msra.mxu0 0.0
    %459 = vmatprep.mubr.f32.mxu0 0.0
    %460 = vmatmul.mubr.f32.gmra.mrb[0].mxu0 %v393
    %v461 = vpop.f32.mrb[0].mxu0
    %v462 = vadd.f32 0.0, %v461
    %v463 = vpop.f32.mrb[0].mxu0
    %464 = vdwg.mxu0
    %v466 = vsel %vm391, %v316, 0
    %468 = vmatprep.subr.mxu0 0.0
    %469 = vmatpush1.msra.mxu0 %v246
    %470 = vmatprep.subr.mxu0 0.0
    %471 = vmatpush1.msra.mxu0 0.0
    %472 = vmatprep.subr.mxu0 0.0
    %473 = vmatpush1.msra.mxu0 0.0
    %474 = vmatprep.subr.mxu0 0.0
    %475 = vmatpush1.msra.mxu0 0.0
    %476 = vmatprep.subr.mxu0 0.0
    %477 = vmatpush1.msra.mxu0 0.0
    %478 = vmatprep.subr.mxu0 0.0
    %479 = vmatpush1.msra.mxu0 0.0
    %480 = vmatprep.subr.mxu0 0.0
    %481 = vmatpush1.msra.mxu0 0.0
    %482 = vmatprep.subr.mxu0 0.0
    %483 = vmatpush1.msra.mxu0 0.0
    %484 = vmatprep.subr.mxu0 0.0
    %485 = vmatpush1.msra.mxu0 0.0
    %486 = vmatprep.subr.mxu0 0.0
    %487 = vmatpush1.msra.mxu0 0.0
    %488 = vmatprep.subr.mxu0 0.0
    %489 = vmatpush1.msra.mxu0 0.0
    %490 = vmatprep.subr.mxu0 0.0
    %491 = vmatpush1.msra.mxu0 0.0
    %492 = vmatprep.subr.mxu0 0.0
    %493 = vmatpush1.msra.mxu0 0.0
    %494 = vmatprep.subr.mxu0 0.0
    %495 = vmatpush1.msra.mxu0 0.0
    %496 = vmatprep.subr.mxu0 0.0
    %497 = vmatpush1.msra.mxu0 0.0
    %498 = vmatprep.subr.mxu0 0.0
    %499 = vmatpush1.msra.mxu0 0.0
    %500 = vmatprep.subr.mxu0 0.0
    %501 = vmatpush1.msra.mxu0 0.0
    %502 = vmatprep.subr.mxu0 0.0
    %503 = vmatpush1.msra.mxu0 0.0
    %504 = vmatprep.subr.mxu0 0.0
    %505 = vmatpush1.msra.mxu0 0.0
    %506 = vmatprep.subr.mxu0 0.0
    %507 = vmatpush1.msra.mxu0 0.0
    %508 = vmatprep.subr.mxu0 0.0
    %509 = vmatpush1.msra.mxu0 0.0
    %510 = vmatprep.subr.mxu0 0.0
    %511 = vmatpush1.msra.mxu0 0.0
    %512 = vmatprep.subr.mxu0 0.0
    %513 = vmatpush1.msra.mxu0 0.0
    %514 = vmatprep.subr.mxu0 0.0
    %515 = vmatpush1.msra.mxu0 0.0
    %516 = vmatprep.subr.mxu0 0.0
    %517 = vmatpush1.msra.mxu0 0.0
    %518 = vmatprep.subr.mxu0 0.0
    %519 = vmatpush1.msra.mxu0 0.0
    %520 = vmatprep.subr.mxu0 0.0
    %521 = vmatpush1.msra.mxu0 0.0
    %522 = vmatprep.subr.mxu0 0.0
    %523 = vmatpush1.msra.mxu0 0.0
    %524 = vmatprep.subr.mxu0 0.0
    %525 = vmatpush1.msra.mxu0 0.0
    %526 = vmatprep.subr.mxu0 0.0
    %527 = vmatpush1.msra.mxu0 0.0
    %528 = vmatprep.subr.mxu0 0.0
    %529 = vmatpush1.msra.mxu0 0.0
    %530 = vmatprep.subr.mxu0 0.0
    %531 = vmatpush1.msra.mxu0 0.0
    %532 = vmatprep.mubr.f32.mxu0 0.0
    %533 = vmatmul.mubr.f32.gmra.mrb[0].mxu0 %v466
    %v534 = vpop.f32.mrb[0].mxu0
    %v535 = vadd.f32 %v462, %v534
    %v536 = vpop.f32.mrb[0].mxu0
    %537 = vdwg.mxu0
    %538 = vst [vmem:[#allocation8] sm:$0xff] %v535
    %539 = vst [vmem:[#allocation9] sm:$0xff] %v177
    %540 = vst [vmem:[#allocation11] sm:$0xff] %v246
    // Predicated region
    $region30: #{tpu_custom_call.1} parent=1 // pred_check
      _
    $region31: #{tpu_custom_call.1} parent=1 // pred_check_branch
      %542 = sbr.rel (0) target = $region33
    $region32: #{tpu_custom_call.1} parent=1 // pred_region
      %s544 = ssub.s32 128, 128
      %545 = vsyncadd [#allocation4], %s544
      %s547 = sshll.u32 [#allocation8], 4
      %s548 = int_to_ptr.vmem [resolvable:$true] %s547
      %550 = dma.vmem_to_hbm [thread:$0]  %s548, 128, %s4, [#allocation4]
    $region33: #{tpu_custom_call.1} parent=1 // pred_fallthru
      _
    // Predicated region
    $region34: #{tpu_custom_call.1} parent=1 // pred_check
      _
    $region35: #{tpu_custom_call.1} parent=1 // pred_check_branch
      %552 = sbr.rel (0) target = $region37
    $region36: #{tpu_custom_call.1} parent=1 // pred_region
      %s554 = ssub.s32 128, 128
      %555 = vsyncadd [#allocation10], %s554
      %s557 = sshll.u32 [#allocation9], 4
      %s558 = int_to_ptr.vmem [resolvable:$true] %s557
      %560 = dma.vmem_to_hbm [thread:$0]  %s558, 128, %s5, [#allocation10]
    $region37: #{tpu_custom_call.1} parent=1 // pred_fallthru
      _
    // Predicated region
    $region38: #{tpu_custom_call.1} parent=1 // pred_check
      _
    $region39: #{tpu_custom_call.1} parent=1 // pred_check_branch
      %562 = sbr.rel (0) target = $region41
    $region40: #{tpu_custom_call.1} parent=1 // pred_region
      %s564 = ssub.s32 128, 128
      %565 = vsyncadd [#allocation10], %s564
      %s567 = sshll.u32 [#allocation11], 4
      %s568 = int_to_ptr.vmem [resolvable:$true] %s567
      %570 = dma.vmem_to_hbm [thread:$0]  %s568, 128, %s6, [#allocation10]
    $region41: #{tpu_custom_call.1} parent=1 // pred_fallthru
      _
    // Predicated region
    $region42: #{tpu_custom_call.1} parent=1 // pred_check
      _
    $region43: #{tpu_custom_call.1} parent=1 // pred_check_branch
      %572 = sbr.rel (0) target = $region45
    $region44: #{tpu_custom_call.1} parent=1 // pred_region
      %573 = dma.done [#allocation4], 128
    $region45: #{tpu_custom_call.1} parent=1 // pred_fallthru
      _
    // Predicated region
    $region46: #{tpu_custom_call.1} parent=1 // pred_check
      _
    $region47: #{tpu_custom_call.1} parent=1 // pred_check_branch
      %575 = sbr.rel (0) target = $region49
    $region48: #{tpu_custom_call.1} parent=1 // pred_region
      %576 = dma.done [#allocation10], 128
    $region49: #{tpu_custom_call.1} parent=1 // pred_fallthru
      _
    // Predicated region
    $region50: #{tpu_custom_call.1} parent=1 // pred_check
      _
    $region51: #{tpu_custom_call.1} parent=1 // pred_check_branch
      %578 = sbr.rel (0) target = $region53
    $region52: #{tpu_custom_call.1} parent=1 // pred_region
      %579 = dma.done [#allocation10], 128
    $region53: #{tpu_custom_call.1} parent=1 // pred_fallthru
      _
    %580 = vsyncpa [#allocation3], 1
    %581 = vsyncpa [#allocation6], 1
    %582 = vsyncpa [#allocation4], 1
    %583 = vsyncpa [#allocation10], 1

</llo_original>
